<compile_context>
chip_gen: v5e
topology: v5e:2x2
jax: 0.10.0
libtpu: 0.0.40
codegen_flags: <defaults>
</compile_context>

<pallas_src>
import math
from functools import partial

import jax
import jax.numpy as jnp
from jax.experimental import pallas as pl
from jax.experimental.pallas import tpu as pltpu


def _loss_tile_kernel(gt_ref, pred_ref, prev_ref, mask_lo_ref, uh_ref, uw_ref,
                      out_ref, *, padding, cout, hh, wh):
    """Per-(batch, row-tile) partial sums for the three enabled loss terms."""
    t = pl.program_id(1)                        # row-tile index

    gt = gt_ref[0].astype(jnp.float32)          # (Cout,   TH, W)
    pred = pred_ref[0].astype(jnp.float32)      # (Cout,   TH, W)
    prev = prev_ref[0].astype(jnp.float32)      # (Cout+1, TH, W)

    th = gt.shape[-2]
    w = gt.shape[-1]

    # Border keep-mask for LossNet.pad (zeroes a `padding`-wide frame).
    # NB: the PyTorch pad uses the image *height* for the width crop too, so
    # square images are asserted in the wrapper (hh == wh).
    if padding > 0:
        row = jax.lax.broadcasted_iota(jnp.int32, (th, w), 0) + t * th
        col = jax.lax.broadcasted_iota(jnp.int32, (th, w), 1)
        keep = ((row >= padding) & (row < hh - padding) &
                (col >= padding) & (col < wh - padding)).astype(jnp.float32)
    else:
        keep = None

    # mse / l1 partial sums:  pad(gt) - pad(pred) == (gt - pred) * keep
    d = gt - pred
    if keep is not None:
        d = d * keep
    sum_sq = jnp.sum(d * d)
    sum_abs = jnp.sum(jnp.abs(d))

    # temporal-L2 partial sum:
    #   concat([pad(pred), upsampled mask (NOT padded)], ch) vs pad(prev_warped)
    dt_rgb = pred - prev[:cout]
    prev_msk = prev[cout]
    if keep is not None:
        dt_rgb = dt_rgb * keep
        prev_msk = prev_msk * keep

    # Nearest-neighbour upsample of the low-res mask block on the MXU.
    mask_lo = mask_lo_ref[0, 0].astype(jnp.float32)           # (TH/s, W/s)
    mask_hi = jnp.dot(
        jnp.dot(uh_ref[...], mask_lo, preferred_element_type=jnp.float32),
        uw_ref[...], preferred_element_type=jnp.float32)      # (TH, W)
    dt_msk = mask_hi - prev_msk
    sum_tmp = jnp.sum(dt_rgb * dt_rgb) + jnp.sum(dt_msk * dt_msk)

    # Pack the three partial sums into one lane-dense (8,128) output block.
    r = jax.lax.broadcasted_iota(jnp.int32, (8, 128), 0)
    out_ref[0, 0, :, :] = jnp.where(
        r == 0, sum_sq,
        jnp.where(r == 1, sum_abs,
                  jnp.where(r == 2, sum_tmp, jnp.float32(0.0))))


def _pick_row_tile(hh, scale_h, bytes_per_row, budget_bytes=16 << 20):
    """Largest TH that divides hh, is a multiple of lcm(8, scale_h), and whose
    double-buffered input slabs fit the scoped-VMEM budget."""
    step = (8 * scale_h) // math.gcd(8, scale_h)     # lcm(8, scale_h)
    divisors = [d for d in range(step, hh + 1, step) if hh % d == 0]
    if not divisors:
        return hh                                    # tiny/odd image: whole frame
    fitting = [d for d in divisors if 2 * d * bytes_per_row <= budget_bytes]
    return max(fitting) if fitting else min(divisors)


def lossnet_forward(gt, pred, input_lr, prev_pred_warped, *,
                    padding, weights, upsample="nearest", row_tile=None):
    """JAX/Pallas equivalent of LossNet.forward for losses mse, l1, temp-l2."""
    B, Cout, Hh, Wh = gt.shape
    assert pred.shape == gt.shape
    B2, Cin, Hl, Wl = input_lr.shape
    assert B2 == B and Cin >= 4
    assert prev_pred_warped.shape == (B, Cout + 1, Hh, Wh)
    assert upsample == "nearest"            # F.interpolate(..., mode='nearest')
    assert Hh % Hl == 0 and Wh % Wl == 0
    assert Hh == Wh, "LossNet.pad uses the height for the width crop (square only)"
    sh, sw = Hh // Hl, Wh // Wl

    isz = lambda a: jnp.dtype(a.dtype).itemsize
    bytes_per_row = Wh * (Cout * (isz(gt) + isz(pred))
                          + (Cout + 1) * isz(prev_pred_warped))
    if row_tile is None:
        row_tile = _pick_row_tile(Hh, sh, bytes_per_row)
    TH = int(row_tile)
    assert Hh % TH == 0 and TH % sh == 0
    assert TH % 8 == 0 or TH == Hh
    NH = Hh // TH
    THl = TH // sh

    # 0/1 nearest-neighbour replication matrices (tiny; stay resident in VMEM
    # since their block index never changes).
    uh = (jnp.arange(TH)[:, None] // sh == jnp.arange(THl)[None, :]).astype(jnp.float32)
    uw = (jnp.arange(Wh)[None, :] // sw == jnp.arange(Wl)[:, None]).astype(jnp.float32)

    kern = partial(_loss_tile_kernel, padding=padding, cout=Cout, hh=Hh, wh=Wh)

    # Scoped-VMEM budget: double-buffered input slabs + f32 working set + slack.
    step_in = TH * bytes_per_row + THl * Wl * isz(input_lr)
    work_f32 = (3 * Cout + 4) * TH * Wh * 4
    vmem_limit = 2 * step_in + work_f32 + (TH * THl + Wl * Wh) * 4 * 2 + (4 << 20)
    vmem_limit = int(min(max(vmem_limit, 16 << 20), 48 << 20))  # v7x-safe cap

    partials = pl.pallas_call(
        kern,
        grid=(B, NH),
        in_specs=[
            pl.BlockSpec((1, Cout, TH, Wh), lambda b, t: (b, 0, t, 0)),
            pl.BlockSpec((1, Cout, TH, Wh), lambda b, t: (b, 0, t, 0)),
            pl.BlockSpec((1, Cout + 1, TH, Wh), lambda b, t: (b, 0, t, 0)),
            # low-res mask = channel 3 of the network input, selected via index_map
            pl.BlockSpec((1, 1, THl, Wl), lambda b, t: (b, 3, t, 0)),
            pl.BlockSpec((TH, THl), lambda b, t: (0, 0)),
            pl.BlockSpec((Wl, Wh), lambda b, t: (0, 0)),
        ],
        out_specs=pl.BlockSpec((1, 1, 8, 128), lambda b, t: (b, t, 0, 0)),
        out_shape=jax.ShapeDtypeStruct((B, NH, 8, 128), jnp.float32),
        compiler_params=pltpu.CompilerParams(
            dimension_semantics=("parallel", "parallel"),
            vmem_limit_bytes=vmem_limit),
    )(gt, pred, prev_pred_warped, input_lr, uh, uw)

    # Tiny cross-tile reduction + loss weighting in plain JAX.
    sums = jnp.sum(partials[:, :, :3, 0], axis=(0, 1))    # (3,)
    n_img = B * Cout * Hh * Wh
    n_tmp = B * (Cout + 1) * Hh * Wh
    mse = sums[0] / n_img
    l1 = sums[1] / n_img
    temp_l2 = sums[2] / n_tmp

    loss_values = {"mse": mse, "l1": l1, "temp-l2": temp_l2}
    generator_loss = (weights.get("mse", 0.0) * mse
                      + weights.get("l1", 0.0) * l1
                      + weights.get("temp-l2", 0.0) * temp_l2)
    return generator_loss, loss_values


# ---------------- pure-JAX reference (mirrors the PyTorch code) ----------------
def _pad_ref(img, border):
    if border == 0:
        return img
    b, c, h, w = img.shape
    # NB: PyTorch code slices width with `h - border` too (square images assumed).
    crop = img[:, :, border:h - border, border:h - border]
    return jnp.pad(crop, ((0, 0), (0, 0), (border, border), (border, border)))


def reference_forward(gt, pred, input_lr, prev_pred_warped, *, padding, weights):
    B, Cout, Hh, Wh = gt.shape
    _, _, Hl, Wl = input_lr.shape
    gt_p = _pad_ref(gt, padding)
    pred_p = _pad_ref(pred, padding)
    prev_p = _pad_ref(prev_pred_warped, padding)
    mse = jnp.mean((gt_p - pred_p) ** 2)
    l1 = jnp.mean(jnp.abs(gt_p - pred_p))
    mask_hi = jnp.repeat(jnp.repeat(input_lr[:, 3:4], Hh // Hl, axis=2),
                         Wh // Wl, axis=3)
    pred_with_mask = jnp.concatenate([pred_p, mask_hi], axis=1)
    temp = jnp.mean((pred_with_mask - prev_p) ** 2)
    gen = (weights["mse"] * mse + weights["l1"] * l1 + weights["temp-l2"] * temp)
    return gen, {"mse": mse, "l1": l1, "temp-l2": temp}


if __name__ == "__main__":
    # Configuration implied by the module:
    #   input_channels = 4 (RGB + mask), output_channels = 3, 4x superresolution.
    B, Cin, Cout = 2, 4, 3
    Hl = Wl = 32
    scale = 4
    Hh, Wh = Hl * scale, Wl * scale           # 128 x 128 (lane-dense last dim)
    padding = 2
    weights = {"mse": 1.0, "l1": 0.5, "temp-l2": 0.25}

    key = jax.random.PRNGKey(0)
    k1, k2, k3, k4 = jax.random.split(key, 4)
    gt = jax.random.normal(k1, (B, Cout, Hh, Wh), jnp.float32)
    pred = jax.random.normal(k2, (B, Cout, Hh, Wh), jnp.float32)
    input_lr = jax.random.normal(k3, (B, Cin, Hl, Wl), jnp.float32)
    prev_pred_warped = jax.random.normal(k4, (B, Cout + 1, Hh, Wh), jnp.float32)

    # row_tile=32 -> grid (B, 4): exercises row tiling and per-tile partials.
    gen_loss, loss_values = lossnet_forward(
        gt, pred, input_lr, prev_pred_warped,
        padding=padding, weights=weights, upsample="nearest", row_tile=32)
    gen_loss = jax.block_until_ready(gen_loss)

    ref_loss, ref_values = reference_forward(
        gt, pred, input_lr, prev_pred_warped, padding=padding, weights=weights)

    assert abs(float(gen_loss) - float(ref_loss)) < 1e-3, (
        f"mismatch: kernel={float(gen_loss)} ref={float(ref_loss)}")
    for k in ref_values:
        assert abs(float(loss_values[k]) - float(ref_values[k])) < 1e-3, (
            f"{k}: kernel={float(loss_values[k])} ref={float(ref_values[k])}")

    print("KERNEL_OK")
</pallas_src>

<mosaic_0001>
module attributes {stable_mosaic.version = 11 : i64} {
  func.func @_loss_tile_kernel(%arg0: i32, %arg1: i32, %arg2: memref<1x3x32x128xf32, #tpu.memory_space<vmem>>, %arg3: memref<1x3x32x128xf32, #tpu.memory_space<vmem>>, %arg4: memref<1x4x32x128xf32, #tpu.memory_space<vmem>>, %arg5: memref<1x1x8x32xf32, #tpu.memory_space<vmem>>, %arg6: memref<32x8xf32, #tpu.memory_space<vmem>>, %arg7: memref<32x128xf32, #tpu.memory_space<vmem>>, %arg8: memref<1x1x8x128xf32, #tpu.memory_space<vmem>>) attributes {dimension_semantics = [#tpu.dimension_semantics<parallel>, #tpu.dimension_semantics<parallel>], iteration_bounds = array<i64: 2, 4>, scalar_prefetch = 0 : i64, scratch_operands = 0 : i64, tpu.core_type = #tpu.core_type<tc>, window_params = [{transform_indices = @transform_0, window_bounds = array<i64: 1, 3, 32, 128>}, {transform_indices = @transform_1, window_bounds = array<i64: 1, 3, 32, 128>}, {transform_indices = @transform_2, window_bounds = array<i64: 1, 4, 32, 128>}, {transform_indices = @transform_3, window_bounds = array<i64: 1, 1, 8, 32>}, {pipeline_mode = #tpu.pipeline_mode<synchronous>, transform_indices = @transform_4, window_bounds = array<i64: 32, 8>}, {pipeline_mode = #tpu.pipeline_mode<synchronous>, transform_indices = @transform_5, window_bounds = array<i64: 32, 128>}, {transform_indices = @transform_6, window_bounds = array<i64: 1, 1, 8, 128>}]} {
    %c0 = arith.constant 0 : index
    %c0_0 = arith.constant 0 : index
    %c0_1 = arith.constant 0 : index
    %c0_2 = arith.constant 0 : index
    %0 = vector.load %arg2[%c0, %c0_0, %c0_1, %c0_2] : memref<1x3x32x128xf32, #tpu.memory_space<vmem>>, vector<1x3x32x128xf32>
    %1 = vector.shape_cast %0 : vector<1x3x32x128xf32> to vector<3x32x128xf32>
    %c0_3 = arith.constant 0 : index
    %c0_4 = arith.constant 0 : index
    %c0_5 = arith.constant 0 : index
    %c0_6 = arith.constant 0 : index
    %2 = vector.load %arg3[%c0_3, %c0_4, %c0_5, %c0_6] : memref<1x3x32x128xf32, #tpu.memory_space<vmem>>, vector<1x3x32x128xf32>
    %3 = vector.shape_cast %2 : vector<1x3x32x128xf32> to vector<3x32x128xf32>
    %c0_7 = arith.constant 0 : index
    %c0_8 = arith.constant 0 : index
    %c0_9 = arith.constant 0 : index
    %c0_10 = arith.constant 0 : index
    %4 = vector.load %arg4[%c0_7, %c0_8, %c0_9, %c0_10] : memref<1x4x32x128xf32, #tpu.memory_space<vmem>>, vector<1x4x32x128xf32>
    %5 = vector.shape_cast %4 : vector<1x4x32x128xf32> to vector<4x32x128xf32>
    %6 = tpu.iota {dimensions = array<i32: 0>} : vector<32x128xi32>
    %c32_i32 = arith.constant 32 : i32
    %7 = arith.muli %arg1, %c32_i32 : i32
    %8 = vector.broadcast %7 : i32 to vector<32x128xi32>
    %9 = arith.addi %6, %8 : vector<32x128xi32>
    %10 = tpu.iota {dimensions = array<i32: 1>} : vector<32x128xi32>
    %c2_i32 = arith.constant 2 : i32
    %11 = vector.broadcast %c2_i32 : i32 to vector<32x128xi32>
    %12 = arith.cmpi sge, %9, %11 : vector<32x128xi32>
    %c126_i32 = arith.constant 126 : i32
    %13 = vector.broadcast %c126_i32 : i32 to vector<32x128xi32>
    %14 = arith.cmpi slt, %9, %13 : vector<32x128xi32>
    %15 = arith.andi %12, %14 : vector<32x128xi1>
    %c2_i32_11 = arith.constant 2 : i32
    %16 = vector.broadcast %c2_i32_11 : i32 to vector<32x128xi32>
    %17 = arith.cmpi sge, %10, %16 : vector<32x128xi32>
    %18 = arith.andi %15, %17 : vector<32x128xi1>
    %c126_i32_12 = arith.constant 126 : i32
    %19 = vector.broadcast %c126_i32_12 : i32 to vector<32x128xi32>
    %20 = arith.cmpi slt, %10, %19 : vector<32x128xi32>
    %21 = arith.andi %18, %20 : vector<32x128xi1>
    %22 = arith.extui %21 : vector<32x128xi1> to vector<32x128xi32>
    %23 = arith.sitofp %22 : vector<32x128xi32> to vector<32x128xf32>
    %24 = arith.subf %1, %3 : vector<3x32x128xf32>
    %25 = vector.shape_cast %23 : vector<32x128xf32> to vector<1x32x128xf32>
    %26 = vector.broadcast %25 : vector<1x32x128xf32> to vector<3x32x128xf32>
    %27 = arith.mulf %24, %26 : vector<3x32x128xf32>
    %28 = arith.mulf %27, %27 : vector<3x32x128xf32>
    %29 = vector.shape_cast %28 : vector<3x32x128xf32> to vector<1x3x32x128xf32>
    %cst = arith.constant dense<0.000000e+00> : vector<1xf32>
    %30 = vector.multi_reduction <add>, %29, %cst [1, 2, 3] : vector<1x3x32x128xf32> to vector<1xf32>
    %31 = vector.shape_cast %30 : vector<1xf32> to vector<1x1x1x1xf32>
    %32 = vector.extract %31[0, 0, 0, 0] : f32 from vector<1x1x1x1xf32>
    %33 = math.absf %27 : vector<3x32x128xf32>
    %34 = vector.shape_cast %33 : vector<3x32x128xf32> to vector<1x3x32x128xf32>
    %cst_13 = arith.constant dense<0.000000e+00> : vector<1xf32>
    %35 = vector.multi_reduction <add>, %34, %cst_13 [1, 2, 3] : vector<1x3x32x128xf32> to vector<1xf32>
    %36 = vector.shape_cast %35 : vector<1xf32> to vector<1x1x1x1xf32>
    %37 = vector.extract %36[0, 0, 0, 0] : f32 from vector<1x1x1x1xf32>
    %38 = vector.extract_strided_slice %5 {offsets = [0, 0, 0], sizes = [3, 32, 128], strides = [1, 1, 1]} : vector<4x32x128xf32> to vector<3x32x128xf32>
    %39 = arith.subf %3, %38 : vector<3x32x128xf32>
    %40 = vector.extract_strided_slice %5 {offsets = [3, 0, 0], sizes = [1, 32, 128], strides = [1, 1, 1]} : vector<4x32x128xf32> to vector<1x32x128xf32>
    %41 = vector.shape_cast %40 : vector<1x32x128xf32> to vector<32x128xf32>
    %42 = vector.shape_cast %23 : vector<32x128xf32> to vector<1x32x128xf32>
    %43 = vector.broadcast %42 : vector<1x32x128xf32> to vector<3x32x128xf32>
    %44 = arith.mulf %39, %43 : vector<3x32x128xf32>
    %45 = arith.mulf %41, %23 : vector<32x128xf32>
    %c0_14 = arith.constant 0 : index
    %c0_15 = arith.constant 0 : index
    %c0_16 = arith.constant 0 : index
    %c0_17 = arith.constant 0 : index
    %46 = vector.load %arg5[%c0_14, %c0_15, %c0_16, %c0_17] : memref<1x1x8x32xf32, #tpu.memory_space<vmem>>, vector<1x1x8x32xf32>
    %47 = vector.shape_cast %46 : vector<1x1x8x32xf32> to vector<8x32xf32>
    %c0_18 = arith.constant 0 : index
    %c0_19 = arith.constant 0 : index
    %48 = vector.load %arg6[%c0_18, %c0_19] : memref<32x8xf32, #tpu.memory_space<vmem>>, vector<32x8xf32>
    %cst_20 = arith.constant dense<0.000000e+00> : vector<32x32xf32>
    %49 = tpu.matmul %48, %47, %cst_20 {dimension_numbers = #tpu.dot_dimension_numbers<[1], [0], [0], [1], [0, 0, 1, 1], [], []>} : vector<32x8xf32>, vector<8x32xf32>, vector<32x32xf32> -> vector<32x32xf32>
    %c0_21 = arith.constant 0 : index
    %c0_22 = arith.constant 0 : index
    %50 = vector.load %arg7[%c0_21, %c0_22] : memref<32x128xf32, #tpu.memory_space<vmem>>, vector<32x128xf32>
    %cst_23 = arith.constant dense<0.000000e+00> : vector<32x128xf32>
    %51 = tpu.matmul %49, %50, %cst_23 {dimension_numbers = #tpu.dot_dimension_numbers<[1], [0], [0], [1], [0, 0, 1, 1], [], []>} : vector<32x32xf32>, vector<32x128xf32>, vector<32x128xf32> -> vector<32x128xf32>
    %52 = arith.subf %51, %45 : vector<32x128xf32>
    %53 = arith.mulf %44, %44 : vector<3x32x128xf32>
    %54 = vector.shape_cast %53 : vector<3x32x128xf32> to vector<1x3x32x128xf32>
    %cst_24 = arith.constant dense<0.000000e+00> : vector<1xf32>
    %55 = vector.multi_reduction <add>, %54, %cst_24 [1, 2, 3] : vector<1x3x32x128xf32> to vector<1xf32>
    %56 = vector.shape_cast %55 : vector<1xf32> to vector<1x1x1x1xf32>
    %57 = vector.extract %56[0, 0, 0, 0] : f32 from vector<1x1x1x1xf32>
    %58 = arith.mulf %52, %52 : vector<32x128xf32>
    %59 = vector.shape_cast %58 : vector<32x128xf32> to vector<1x32x128xf32>
    %cst_25 = arith.constant dense<0.000000e+00> : vector<1xf32>
    %60 = vector.multi_reduction <add>, %59, %cst_25 [1, 2] : vector<1x32x128xf32> to vector<1xf32>
    %61 = vector.shape_cast %60 : vector<1xf32> to vector<1x1x1xf32>
    %62 = vector.extract %61[0, 0, 0] : f32 from vector<1x1x1xf32>
    %63 = arith.addf %57, %62 : f32
    %64 = tpu.iota {dimensions = array<i32: 0>} : vector<8x128xi32>
    %c0_i32 = arith.constant 0 : i32
    %65 = vector.broadcast %c0_i32 : i32 to vector<8x128xi32>
    %66 = arith.cmpi eq, %64, %65 : vector<8x128xi32>
    %c1_i32 = arith.constant 1 : i32
    %67 = vector.broadcast %c1_i32 : i32 to vector<8x128xi32>
    %68 = arith.cmpi eq, %64, %67 : vector<8x128xi32>
    %c2_i32_26 = arith.constant 2 : i32
    %69 = vector.broadcast %c2_i32_26 : i32 to vector<8x128xi32>
    %70 = arith.cmpi eq, %64, %69 : vector<8x128xi32>
    %cst_27 = arith.constant 0.000000e+00 : f32
    %71 = vector.broadcast %63 : f32 to vector<8x128xf32>
    %72 = vector.broadcast %cst_27 : f32 to vector<8x128xf32>
    %73 = arith.select %70, %71, %72 : vector<8x128xi1>, vector<8x128xf32>
    %74 = vector.broadcast %37 : f32 to vector<8x128xf32>
    %75 = arith.select %68, %74, %73 : vector<8x128xi1>, vector<8x128xf32>
    %76 = vector.broadcast %32 : f32 to vector<8x128xf32>
    %77 = arith.select %66, %76, %75 : vector<8x128xi1>, vector<8x128xf32>
    %c0_28 = arith.constant 0 : index
    %c0_29 = arith.constant 0 : index
    %c0_30 = arith.constant 0 : index
    %c0_31 = arith.constant 0 : index
    %78 = vector.load %arg8[%c0_28, %c0_29, %c0_30, %c0_31] : memref<1x1x8x128xf32, #tpu.memory_space<vmem>>, vector<1x1x8x128xf32>
    %79 = vector.shape_cast %78 : vector<1x1x8x128xf32> to vector<8x128xf32>
    %80 = vector.shape_cast %77 : vector<8x128xf32> to vector<1x1x8x128xf32>
    tpu.vector_store %arg8[%c0_28, %c0_29, %c0_30, %c0_31], %80 {strides = array<i32>} : memref<1x1x8x128xf32, #tpu.memory_space<vmem>>, vector<1x1x8x128xf32>,
    return
  }
  func.func @transform_0(%arg0: i32, %arg1: i32) -> (i32, i32, i32, i32) {
    %c0_i32 = arith.constant 0 : i32
    %c0_i32_0 = arith.constant 0 : i32
    %c0_i32_1 = arith.constant 0 : i32
    return %arg0, %c0_i32, %arg1, %c0_i32_0 : i32, i32, i32, i32
  }
  func.func @transform_1(%arg0: i32, %arg1: i32) -> (i32, i32, i32, i32) {
    %c0_i32 = arith.constant 0 : i32
    %c0_i32_0 = arith.constant 0 : i32
    %c0_i32_1 = arith.constant 0 : i32
    return %arg0, %c0_i32, %arg1, %c0_i32_0 : i32, i32, i32, i32
  }
  func.func @transform_2(%arg0: i32, %arg1: i32) -> (i32, i32, i32, i32) {
    %c0_i32 = arith.constant 0 : i32
    %c0_i32_0 = arith.constant 0 : i32
    %c0_i32_1 = arith.constant 0 : i32
    return %arg0, %c0_i32, %arg1, %c0_i32_0 : i32, i32, i32, i32
  }
  func.func @transform_3(%arg0: i32, %arg1: i32) -> (i32, i32, i32, i32) {
    %c3_i32 = arith.constant 3 : i32
    %c0_i32 = arith.constant 0 : i32
    %c0_i32_0 = arith.constant 0 : i32
    return %arg0, %c3_i32, %arg1, %c0_i32 : i32, i32, i32, i32
  }
  func.func @transform_4(%arg0: i32, %arg1: i32) -> (i32, i32) {
    %c0_i32 = arith.constant 0 : i32
    %c0_i32_0 = arith.constant 0 : i32
    %c0_i32_1 = arith.constant 0 : i32
    return %c0_i32, %c0_i32_0 : i32, i32
  }
  func.func @transform_5(%arg0: i32, %arg1: i32) -> (i32, i32) {
    %c0_i32 = arith.constant 0 : i32
    %c0_i32_0 = arith.constant 0 : i32
    %c0_i32_1 = arith.constant 0 : i32
    return %c0_i32, %c0_i32_0 : i32, i32
  }
  func.func @transform_6(%arg0: i32, %arg1: i32) -> (i32, i32, i32, i32) {
    %c0_i32 = arith.constant 0 : i32
    %c0_i32_0 = arith.constant 0 : i32
    %c0_i32_1 = arith.constant 0 : i32
    return %arg0, %arg1, %c0_i32, %c0_i32_0 : i32, i32, i32, i32
  }
}

</mosaic_0001>

<llo_original>
// kernel: tpu_custom_call.1
$region0: #{tpu_custom_call.1}
  #allocation0 [shape = 'u32[]', space=smem, size = 0x4, offset = 0x4, fixed_abs, tag = 'smem constant byte address 0x4 - core index']
  #allocation1 [shape = 'u32[72,128]{1,0:T(1,128)}', space=vmem, size = 0x9000, scoped, tag = 'internal scratch']
  #allocation11 [shape = 's32[]', space=sflag, size = 0x4, offset = 0, fixed_abs, tag = 'sflag constant byte address 0x0 - dummy sync flag']
  #allocation13 [shape = 's32[]', space=sflag, size = 0x4, offset = 0, fixed_abs, tag = 'sflag constant byte address 0x0 - dummy sync flag']
  #allocation15 [shape = 's32[]', space=sflag, size = 0x4, offset = 0, fixed_abs, tag = 'sflag constant byte address 0x0 - dummy sync flag']
  %s0 = inlined_call_operand.hbm [shape: f32[2,3,128,128], index: 0, kind: input, shape index: {}]
  %s1 = inlined_call_operand.hbm [shape: f32[2,3,128,128], index: 1, kind: input, shape index: {}]
  %s2 = inlined_call_operand.hbm [shape: f32[2,4,128,128], index: 2, kind: input, shape index: {}]
  %s3 = inlined_call_operand.hbm [shape: f32[2,4,32,32], index: 3, kind: input, shape index: {}]
  %s4 = inlined_call_operand.vmem [shape: f32[32,8], index: 4, kind: input, shape index: {}]
  %s5 = inlined_call_operand.vmem [shape: f32[32,128], index: 5, kind: input, shape index: {}]
  %s6 = inlined_call_operand.hbm [shape: f32[2,4,8,128], index: 6, kind: output, shape index: {}]
  %s7 = sld [smem:[#allocation0]]
  $region73: #{tpu_custom_call.1} parent=0
    _
  %s9 = ssub.s32 1, %s7
  %s10 = scalar_select 0, %s9, %s7
  $region1: #{tpu_custom_call.1} parent=0
    #allocation2 [shape = 'u8[98304]{0}', space=vmem, size = 0x18000, scoped, tag = 'input window, operand 0']
    #allocation3 [shape = 's32[2]{0}', space=sflag, size = 0x8, scoped, tag = 'scoped memory for tpu_custom_call.1']
    #allocation4 [shape = 's32[2]{0}', space=sflag, size = 0x8, scoped, tag = 'scoped memory for tpu_custom_call.1']
    #allocation5 [shape = 'u8[98304]{0}', space=vmem, size = 0x18000, scoped, tag = 'input window, operand 1']
    #allocation6 [shape = 's32[2]{0}', space=sflag, size = 0x8, scoped, tag = 'scoped memory for tpu_custom_call.1']
    #allocation7 [shape = 'u8[131072]{0}', space=vmem, size = 0x20000, scoped, tag = 'input window, operand 2']
    #allocation8 [shape = 'u8[8192]{0}', space=vmem, size = 0x2000, scoped, tag = 'input window, operand 3']
    #allocation9 [shape = 's32[2]{0}', space=sflag, size = 0x8, scoped, tag = 'scoped memory for tpu_custom_call.1']
    #allocation10 [shape = 'u8[8192]{0}', space=vmem, size = 0x2000, scoped, tag = 'output window, operand 0']
    %11 = vsyncpa [#allocation3], 0
    %s12 = scalar_lea.sflag [#allocation3], 1
    %13 = vsyncpa %s12, 0
    %14 = vsyncpa [#allocation6], 0
    %s15 = scalar_lea.sflag [#allocation6], 1
    %16 = vsyncpa %s15, 0
    %17 = vsyncpa [#allocation9], 0
    %s18 = scalar_lea.sflag [#allocation9], 1
    %19 = vsyncpa %s18, 0
    %20 = vsyncpa [#allocation4], 0
    %s21 = scalar_lea.sflag [#allocation4], 1
    %22 = vsyncpa %s21, 0
    loop: start=0, step=1, limit=10
    $region2: #{tpu_custom_call.1} parent=1 // loop_pre_header
      _
    $region3: #{tpu_custom_call.1} parent=1 // loop_header
      %s24 = sphi 0, %s28
      %p25 = scmp.ge.s32.totalorder %s24, 10
      %s31 = sphi 0, %s43
      %s32 = sphi 0, %s39
      %s33 = sphi 0, %s31
      %s34 = sphi 0, %s32
      %s35 = sphi 0, %s33
      %s36 = sphi 0, %s34
      %s48 = sphi 0, %s50
      %s51 = sphi 0, %s48
      %s52 = sphi 0, %s51
      %s68 = sphi 0, %s52
      %s76 = sphi 0, %s78
      %s79 = sphi 0, %s76
      %s80 = sphi 0, %s79
      %s96 = sphi 0, %s80
      %s104 = sphi 0, %s106
      %s107 = sphi 0, %s104
      %s108 = sphi 0, %s107
      %s124 = sphi 0, %s108
      %s132 = sphi 0, %s134
      %s135 = sphi 0, %s132
      %s136 = sphi 0, %s135
      %s152 = sphi 0, %s136
      %s156 = sphi 0, %s156
      %s158 = sphi 0, %s156
      %s159 = sphi 0, %s158
      %s173 = sphi 0, %s159
      %s177 = sphi 0, %s177
      %s179 = sphi 0, %s177
      %s180 = sphi 0, %s179
      %s194 = sphi 0, %s180
      %s202 = sphi 0, %s204
      %s205 = sphi 0, %s202
      %s206 = sphi 0, %s205
      %s222 = sphi 0, %s206
    $region4: #{tpu_custom_call.1} parent=1 // loop_header_branch
      %27 = sbr.rel (%p25) target = $region8
    $region5: #{tpu_custom_call.1} parent=1 // loop_body
      %s29 = ssub.s32 %s24, 1
      %s30 = ssub.s32 %s24, 2
      %s37 = sadd.s32 1, %s32
      %p38 = scmp.ge.s32.totalorder %s37, 4
      %s39 = scalar_select %p38, 0, %s37
      %s40 = sadd.s32 1, %s31
      %s41 = scalar_select %p38, %s40, %s31
      %p42 = scmp.ge.s32.totalorder %s41, 2
      %s43 = scalar_select %p42, 0, %s41
      %s44 = ssub.s32 %s31, %s43
      %s45 = ssub.s32 %s32, %s39
      %s46 = sor.u32 %s44, %s45
      %p47 = scmp.eq.s32.totalorder %s46, 0
      %s49 = sadd.s32 %s48, 1
      %s50 = scalar_select %p47, %s48, %s49
      %p53 = pneg %p47
      %p54 = scmp.eq.s32.totalorder %s24, 7
      %p55 = por %p53, %p54
      %p56 = scmp.ne.s32.totalorder %s48, %s51
      %p57 = scmp.eq.s32.totalorder %s24, 0
      %p58 = por %p56, %p57
      %p59 = scmp.ne.s32.totalorder %s48, %s51
      %p60 = scmp.eq.s32.totalorder %s29, 7
      %p61 = por %p59, %p60
      %p62 = scmp.ne.s32.totalorder %s51, %s52
      %p63 = scmp.eq.s32.totalorder %s29, 0
      %p64 = por %p62, %p63
      %p65 = scmp.ne.s32.totalorder %s51, %s52
      %p66 = scmp.eq.s32.totalorder %s30, 7
      %p67 = por %p65, %p66
      %p69 = scmp.ne.s32.totalorder %s52, %s68
      %p70 = scmp.eq.s32.totalorder %s30, 0
      %p71 = por %p69, %p70
      %s72 = ssub.s32 %s31, %s43
      %s73 = ssub.s32 %s32, %s39
      %s74 = sor.u32 %s72, %s73
      %p75 = scmp.eq.s32.totalorder %s74, 0
      %s77 = sadd.s32 %s76, 1
      %s78 = scalar_select %p75, %s76, %s77
      %p81 = pneg %p75
      %p82 = scmp.eq.s32.totalorder %s24, 7
      %p83 = por %p81, %p82
      %p84 = scmp.ne.s32.totalorder %s76, %s79
      %p85 = scmp.eq.s32.totalorder %s24, 0
      %p86 = por %p84, %p85
      %p87 = scmp.ne.s32.totalorder %s76, %s79
      %p88 = scmp.eq.s32.totalorder %s29, 7
      %p89 = por %p87, %p88
      %p90 = scmp.ne.s32.totalorder %s79, %s80
      %p91 = scmp.eq.s32.totalorder %s29, 0
      %p92 = por %p90, %p91
      %p93 = scmp.ne.s32.totalorder %s79, %s80
      %p94 = scmp.eq.s32.totalorder %s30, 7
      %p95 = por %p93, %p94
      %p97 = scmp.ne.s32.totalorder %s80, %s96
      %p98 = scmp.eq.s32.totalorder %s30, 0
      %p99 = por %p97, %p98
      %s100 = ssub.s32 %s31, %s43
      %s101 = ssub.s32 %s32, %s39
      %s102 = sor.u32 %s100, %s101
      %p103 = scmp.eq.s32.totalorder %s102, 0
      %s105 = sadd.s32 %s104, 1
      %s106 = scalar_select %p103, %s104, %s105
      %p109 = pneg %p103
      %p110 = scmp.eq.s32.totalorder %s24, 7
      %p111 = por %p109, %p110
      %p112 = scmp.ne.s32.totalorder %s104, %s107
      %p113 = scmp.eq.s32.totalorder %s24, 0
      %p114 = por %p112, %p113
      %p115 = scmp.ne.s32.totalorder %s104, %s107
      %p116 = scmp.eq.s32.totalorder %s29, 7
      %p117 = por %p115, %p116
      %p118 = scmp.ne.s32.totalorder %s107, %s108
      %p119 = scmp.eq.s32.totalorder %s29, 0
      %p120 = por %p118, %p119
      %p121 = scmp.ne.s32.totalorder %s107, %s108
      %p122 = scmp.eq.s32.totalorder %s30, 7
      %p123 = por %p121, %p122
      %p125 = scmp.ne.s32.totalorder %s108, %s124
      %p126 = scmp.eq.s32.totalorder %s30, 0
      %p127 = por %p125, %p126
      %s128 = ssub.s32 %s31, %s43
      %s129 = ssub.s32 %s32, %s39
      %s130 = sor.u32 %s128, %s129
      %p131 = scmp.eq.s32.totalorder %s130, 0
      %s133 = sadd.s32 %s132, 1
      %s134 = scalar_select %p131, %s132, %s133
      %p137 = pneg %p131
      %p138 = scmp.eq.s32.totalorder %s24, 7
      %p139 = por %p137, %p138
      %p140 = scmp.ne.s32.totalorder %s132, %s135
      %p141 = scmp.eq.s32.totalorder %s24, 0
      %p142 = por %p140, %p141
      %p143 = scmp.ne.s32.totalorder %s132, %s135
      %p144 = scmp.eq.s32.totalorder %s29, 7
      %p145 = por %p143, %p144
      %p146 = scmp.ne.s32.totalorder %s135, %s136
      %p147 = scmp.eq.s32.totalorder %s29, 0
      %p148 = por %p146, %p147
      %p149 = scmp.ne.s32.totalorder %s135, %s136
      %p150 = scmp.eq.s32.totalorder %s30, 7
      %p151 = por %p149, %p150
      %p153 = scmp.ne.s32.totalorder %s136, %s152
      %p154 = scmp.eq.s32.totalorder %s30, 0
      %p155 = por %p153, %p154
      %s157 = sadd.s32 %s156, 1
      %p160 = scmp.eq.s32.totalorder %s24, 7
      %p161 = scmp.ne.s32.totalorder %s156, %s158
      %p162 = scmp.eq.s32.totalorder %s24, 0
      %p163 = por %p161, %p162
      %p164 = scmp.ne.s32.totalorder %s156, %s158
      %p165 = scmp.eq.s32.totalorder %s29, 7
      %p166 = por %p164, %p165
      %p167 = scmp.ne.s32.totalorder %s158, %s159
      %p168 = scmp.eq.s32.totalorder %s29, 0
      %p169 = por %p167, %p168
      %p170 = scmp.ne.s32.totalorder %s158, %s159
      %p171 = scmp.eq.s32.totalorder %s30, 7
      %p172 = por %p170, %p171
      %p174 = scmp.ne.s32.totalorder %s159, %s173
      %p175 = scmp.eq.s32.totalorder %s30, 0
      %p176 = por %p174, %p175
      %s178 = sadd.s32 %s177, 1
      %p181 = scmp.eq.s32.totalorder %s24, 7
      %p182 = scmp.ne.s32.totalorder %s177, %s179
      %p183 = scmp.eq.s32.totalorder %s24, 0
      %p184 = por %p182, %p183
      %p185 = scmp.ne.s32.totalorder %s177, %s179
      %p186 = scmp.eq.s32.totalorder %s29, 7
      %p187 = por %p185, %p186
      %p188 = scmp.ne.s32.totalorder %s179, %s180
      %p189 = scmp.eq.s32.totalorder %s29, 0
      %p190 = por %p188, %p189
      %p191 = scmp.ne.s32.totalorder %s179, %s180
      %p192 = scmp.eq.s32.totalorder %s30, 7
      %p193 = por %p191, %p192
      %p195 = scmp.ne.s32.totalorder %s180, %s194
      %p196 = scmp.eq.s32.totalorder %s30, 0
      %p197 = por %p195, %p196
      %s198 = ssub.s32 %s31, %s43
      %s199 = ssub.s32 %s32, %s39
      %s200 = sor.u32 %s198, %s199
      %p201 = scmp.eq.s32.totalorder %s200, 0
      %s203 = sadd.s32 %s202, 1
      %s204 = scalar_select %p201, %s202, %s203
      %p207 = pneg %p201
      %p208 = scmp.eq.s32.totalorder %s24, 7
      %p209 = por %p207, %p208
      %p210 = scmp.ne.s32.totalorder %s202, %s205
      %p211 = scmp.eq.s32.totalorder %s24, 0
      %p212 = por %p210, %p211
      %p213 = scmp.ne.s32.totalorder %s202, %s205
      %p214 = scmp.eq.s32.totalorder %s29, 7
      %p215 = por %p213, %p214
      %p216 = scmp.ne.s32.totalorder %s205, %s206
      %p217 = scmp.eq.s32.totalorder %s29, 0
      %p218 = por %p216, %p217
      %p219 = scmp.ne.s32.totalorder %s205, %s206
      %p220 = scmp.eq.s32.totalorder %s30, 7
      %p221 = por %p219, %p220
      %p223 = scmp.ne.s32.totalorder %s206, %s222
      %p224 = scmp.eq.s32.totalorder %s30, 0
      %p225 = por %p223, %p224
      %p226 = scmp.le.s32.totalorder 1, %s24
      %p227 = scmp.lt.s32.totalorder %s24, 9
      %p228 = pnand %p226, %p227
      %p229 = pneg %p228
      // Predicated region
      $region9: #{tpu_custom_call.1} parent=5 // pred_check
        _
      $region10: #{tpu_custom_call.1} parent=5 // pred_check_branch
        %231 = sbr.rel (%p228) target = $region12
      $region11: #{tpu_custom_call.1} parent=5 // pred_region
        %s232 = ssub.s32 %s24, 1
        // Predicated region
        $region13: #{tpu_custom_call.1} parent=11 // pred_check
          %p233 = pneg %p169
        $region14: #{tpu_custom_call.1} parent=11 // pred_check_branch
          %235 = sbr.rel (%p233) target = $region16
        $region15: #{tpu_custom_call.1} parent=11 // pred_region
          _
        $region16: #{tpu_custom_call.1} parent=11 // pred_fallthru
          _
        // Predicated region
        $region17: #{tpu_custom_call.1} parent=11 // pred_check
          %p236 = pneg %p190
        $region18: #{tpu_custom_call.1} parent=11 // pred_check_branch
          %238 = sbr.rel (%p236) target = $region20
        $region19: #{tpu_custom_call.1} parent=11 // pred_region
          _
        $region20: #{tpu_custom_call.1} parent=11 // pred_fallthru
          _
      $region12: #{tpu_custom_call.1} parent=5 // pred_fallthru
        _
      %p239 = scmp.lt.s32.totalorder %s24, 8
      // Predicated region
      $region21: #{tpu_custom_call.1} parent=5 // pred_check
        %p240 = pneg %p239
      $region22: #{tpu_custom_call.1} parent=5 // pred_check_branch
        %242 = sbr.rel (%p240) target = $region24
      $region23: #{tpu_custom_call.1} parent=5 // pred_region
        // Predicated region
        $region25: #{tpu_custom_call.1} parent=23 // pred_check
          %p243 = pneg %p58
        $region26: #{tpu_custom_call.1} parent=23 // pred_check_branch
          %245 = sbr.rel (%p243) target = $region28
        $region27: #{tpu_custom_call.1} parent=23 // pred_region
          #allocation12 [shape = 'u32[6]{0}', space=smem, size = 0x18, scoped, tag = 'DMA stride descriptor']
          %s246 = sand.u32 %s48, 1
          %s247 = scalar_lea.sflag [#allocation3], %s246
          %s248 = sand.u32 %s48, 1
          %s249 = smul.addr %s248, 96
          %s250 = scalar_lea.vmem [#allocation2], %s249
          %s251 = smul.u32 4, %s32
          %253 = vsyncadd %s247, 0
          %s254 = smul.addr %s31, 48
          %s255 = sadd.s32 %s251, %s254
          %s256 = smul.addr %s255, 8
          %s257 = scalar_lea.hbm %s0, %s256
          %s259 = sshll.u32 1, 14
          %s260 = sxor.u32 4294967295, %s259
          %s262 = sld [smem:[#allocation0]]
          %s263 = sadd.s32 2, %s262
          %s265 = sshll.u32 7, 26
          %s266 = sxor.u32 4294967295, %s265
          %s267 = sand.u32 0, %s266
          %s268 = sshll.u32 %s263, 26
          %s269 = sor.u32 %s267, %s268
          %s270 = sshll.u32 %s257, 4
          %s271 = int_to_ptr.hbm [resolvable:$true] %s270
          %s272 = sshll.u32 %s250, 4
          %s273 = int_to_ptr.vmem [resolvable:$true] %s272
          %279 = sst [smem:[#allocation12]] 2048
          %s280 = scalar_lea.smem [#allocation12], 1
          %281 = sst [smem:[%s280]] 512
          %s282 = scalar_lea.smem [#allocation12], 2
          %283 = sst [smem:[%s282]] 4
          %s284 = scalar_lea.smem [#allocation12], 3
          %285 = sst [smem:[%s284]] 128
          %s286 = scalar_lea.smem [#allocation12], 4
          %287 = sst [smem:[%s286]] 128
          %s288 = scalar_lea.smem [#allocation12], 5
          %289 = sst [smem:[%s288]] 8
          %291 = dma.general %s271, 1536, %s273, %s247, [#allocation11], [#allocation12], %s269, 0
        $region28: #{tpu_custom_call.1} parent=23 // pred_fallthru
          _
        // Predicated region
        $region29: #{tpu_custom_call.1} parent=23 // pred_check
          %p292 = pneg %p86
        $region30: #{tpu_custom_call.1} parent=23 // pred_check_branch
          %294 = sbr.rel (%p292) target = $region32
        $region31: #{tpu_custom_call.1} parent=23 // pred_region
          #allocation14 [shape = 'u32[6]{0}', space=smem, size = 0x18, scoped, tag = 'DMA stride descriptor']
          %s295 = sand.u32 %s24, 1
          %s296 = scalar_lea.sflag [#allocation6], %s295
          %s297 = sand.u32 %s76, 1
          %s298 = smul.addr %s297, 96
          %s299 = scalar_lea.vmem [#allocation5], %s298
          %s300 = smul.u32 4, %s32
          %302 = vsyncadd %s296, 0
          %s303 = smul.addr %s31, 48
          %s304 = sadd.s32 %s300, %s303
          %s305 = smul.addr %s304, 8
          %s306 = scalar_lea.hbm %s1, %s305
          %s308 = sshll.u32 1, 14
          %s309 = sxor.u32 4294967295, %s308
          %s311 = sld [smem:[#allocation0]]
          %s312 = sadd.s32 2, %s311
          %s314 = sshll.u32 7, 26
          %s315 = sxor.u32 4294967295, %s314
          %s316 = sand.u32 0, %s315
          %s317 = sshll.u32 %s312, 26
          %s318 = sor.u32 %s316, %s317
          %s319 = sshll.u32 %s306, 4
          %s320 = int_to_ptr.hbm [resolvable:$true] %s319
          %s321 = sshll.u32 %s299, 4
          %s322 = int_to_ptr.vmem [resolvable:$true] %s321
          %328 = sst [smem:[#allocation14]] 2048
          %s329 = scalar_lea.smem [#allocation14], 1
          %330 = sst [smem:[%s329]] 512
          %s331 = scalar_lea.smem [#allocation14], 2
          %332 = sst [smem:[%s331]] 4
          %s333 = scalar_lea.smem [#allocation14], 3
          %334 = sst [smem:[%s333]] 128
          %s335 = scalar_lea.smem [#allocation14], 4
          %336 = sst [smem:[%s335]] 128
          %s337 = scalar_lea.smem [#allocation14], 5
          %338 = sst [smem:[%s337]] 8
          %340 = dma.general %s320, 1536, %s322, %s296, [#allocation13], [#allocation14], %s318, 0
        $region32: #{tpu_custom_call.1} parent=23 // pred_fallthru
          _
        // Predicated region
        $region33: #{tpu_custom_call.1} parent=23 // pred_check
          %p341 = pneg %p114
        $region34: #{tpu_custom_call.1} parent=23 // pred_check_branch
          %343 = sbr.rel (%p341) target = $region36
        $region35: #{tpu_custom_call.1} parent=23 // pred_region
          #allocation16 [shape = 'u32[6]{0}', space=smem, size = 0x18, scoped, tag = 'DMA stride descriptor']
          %s344 = sand.u32 %s24, 1
          %s345 = scalar_lea.sflag [#allocation6], %s344
          %s346 = sand.u32 %s104, 1
          %s347 = smul.addr %s346, 128
          %s348 = scalar_lea.vmem [#allocation7], %s347
          %s349 = smul.u32 4, %s32
          %351 = vsyncadd %s345, 0
          %s352 = smul.addr %s31, 64
          %s353 = sadd.s32 %s349, %s352
          %s354 = smul.addr %s353, 8
          %s355 = scalar_lea.hbm %s2, %s354
          %s357 = sshll.u32 1, 14
          %s358 = sxor.u32 4294967295, %s357
          %s360 = sld [smem:[#allocation0]]
          %s361 = sadd.s32 2, %s360
          %s363 = sshll.u32 7, 26
          %s364 = sxor.u32 4294967295, %s363
          %s365 = sand.u32 0, %s364
          %s366 = sshll.u32 %s361, 26
          %s367 = sor.u32 %s365, %s366
          %s368 = sshll.u32 %s355, 4
          %s369 = int_to_ptr.hbm [resolvable:$true] %s368
          %s370 = sshll.u32 %s348, 4
          %s371 = int_to_ptr.vmem [resolvable:$true] %s370
          %377 = sst [smem:[#allocation16]] 2048
          %s378 = scalar_lea.smem [#allocation16], 1
          %379 = sst [smem:[%s378]] 512
          %s380 = scalar_lea.smem [#allocation16], 2
          %381 = sst [smem:[%s380]] 4
          %s382 = scalar_lea.smem [#allocation16], 3
          %383 = sst [smem:[%s382]] 128
          %s384 = scalar_lea.smem [#allocation16], 4
          %385 = sst [smem:[%s384]] 128
          %s386 = scalar_lea.smem [#allocation16], 5
          %387 = sst [smem:[%s386]] 8
          %389 = dma.general %s369, 2048, %s371, %s345, [#allocation15], [#allocation16], %s367, 0
        $region36: #{tpu_custom_call.1} parent=23 // pred_fallthru
          _
        // Predicated region
        $region37: #{tpu_custom_call.1} parent=23 // pred_check
          %p390 = pneg %p142
        $region38: #{tpu_custom_call.1} parent=23 // pred_check_branch
          %392 = sbr.rel (%p390) target = $region40
        $region39: #{tpu_custom_call.1} parent=23 // pred_region
          %s393 = sand.u32 %s132, 1
          %s394 = scalar_lea.sflag [#allocation9], %s393
          %s395 = sand.u32 %s132, 1
          %s396 = smul.addr %s395, 8
          %s397 = scalar_lea.vmem [#allocation8], %s396
          %399 = vsyncadd %s394, 0
          %s400 = sadd.s32 %s32, 12
          %s401 = smul.addr %s31, 16
          %s402 = sadd.s32 %s400, %s401
          %s403 = smul.addr %s402, 8
          %s404 = scalar_lea.hbm %s3, %s403
          %s406 = sshll.u32 %s404, 4
          %s407 = int_to_ptr.hbm [resolvable:$true] %s406
          %s408 = sshll.u32 %s397, 4
          %s409 = int_to_ptr.vmem [resolvable:$true] %s408
          %411 = dma.hbm_to_vmem [thread:$0]  %s407, 128, %s409, %s394
        $region40: #{tpu_custom_call.1} parent=23 // pred_fallthru
          _
      $region24: #{tpu_custom_call.1} parent=5 // pred_fallthru
        _
      %p412 = scmp.le.s32.totalorder 1, %s24
      %p413 = scmp.lt.s32.totalorder %s24, 9
      %p414 = pnand %p412, %p413
      %p415 = pneg %p414
      // Predicated region
      $region41: #{tpu_custom_call.1} parent=5 // pred_check
        _
      $region42: #{tpu_custom_call.1} parent=5 // pred_check_branch
        %417 = sbr.rel (%p414) target = $region44
      $region43: #{tpu_custom_call.1} parent=5 // pred_region
        %s418 = ssub.s32 %s24, 1
        %s419 = sand.u32 %s51, 1
        %s420 = scalar_lea.sflag [#allocation3], %s419
        %s421 = sand.u32 %s51, 1
        %s422 = smul.addr %s421, 96
        %s423 = scalar_lea.vmem [#allocation2], %s422
        // Predicated region
        $region45: #{tpu_custom_call.1} parent=43 // pred_check
          %p424 = pneg %p64
        $region46: #{tpu_custom_call.1} parent=43 // pred_check_branch
          %426 = sbr.rel (%p424) target = $region48
        $region47: #{tpu_custom_call.1} parent=43 // pred_region
          %428 = dma.done %s420, 1536
        $region48: #{tpu_custom_call.1} parent=43 // pred_fallthru
          _
        %s429 = sand.u32 %s29, 1
        %s430 = scalar_lea.sflag [#allocation6], %s429
        %s431 = sand.u32 %s79, 1
        %s432 = smul.addr %s431, 96
        %s433 = scalar_lea.vmem [#allocation5], %s432
        // Predicated region
        $region49: #{tpu_custom_call.1} parent=43 // pred_check
          %p434 = pneg %p92
        $region50: #{tpu_custom_call.1} parent=43 // pred_check_branch
          %436 = sbr.rel (%p434) target = $region52
        $region51: #{tpu_custom_call.1} parent=43 // pred_region
          %438 = dma.done %s430, 1536
        $region52: #{tpu_custom_call.1} parent=43 // pred_fallthru
          _
        %s439 = sand.u32 %s29, 1
        %s440 = scalar_lea.sflag [#allocation6], %s439
        %s441 = sand.u32 %s107, 1
        %s442 = smul.addr %s441, 128
        %s443 = scalar_lea.vmem [#allocation7], %s442
        // Predicated region
        $region53: #{tpu_custom_call.1} parent=43 // pred_check
          %p444 = pneg %p120
        $region54: #{tpu_custom_call.1} parent=43 // pred_check_branch
          %446 = sbr.rel (%p444) target = $region56
        $region55: #{tpu_custom_call.1} parent=43 // pred_region
          %448 = dma.done %s440, 2048
        $region56: #{tpu_custom_call.1} parent=43 // pred_fallthru
          _
        %s449 = sand.u32 %s135, 1
        %s450 = scalar_lea.sflag [#allocation9], %s449
        %s451 = sand.u32 %s135, 1
        %s452 = smul.addr %s451, 8
        %s453 = scalar_lea.vmem [#allocation8], %s452
        // Predicated region
        $region57: #{tpu_custom_call.1} parent=43 // pred_check
          %p454 = pneg %p148
        $region58: #{tpu_custom_call.1} parent=43 // pred_check_branch
          %456 = sbr.rel (%p454) target = $region60
        $region59: #{tpu_custom_call.1} parent=43 // pred_region
          %458 = dma.done %s450, 128
        $region60: #{tpu_custom_call.1} parent=43 // pred_fallthru
          _
        %s459 = sand.u32 %s51, 1
        %s460 = scalar_lea.sflag [#allocation3], %s459
        %s461 = sand.u32 %s51, 1
        %s462 = smul.addr %s461, 96
        %s463 = scalar_lea.vmem [#allocation2], %s462
        %p464 = pneg %p64
        %p465 = pneg %p61
        %s466 = sand.u32 %s29, 1
        %s467 = scalar_lea.sflag [#allocation6], %s466
        %s468 = sand.u32 %s79, 1
        %s469 = smul.addr %s468, 96
        %s470 = scalar_lea.vmem [#allocation5], %s469
        %p471 = pneg %p92
        %p472 = pneg %p89
        %s473 = sand.u32 %s29, 1
        %s474 = scalar_lea.sflag [#allocation6], %s473
        %s475 = sand.u32 %s107, 1
        %s476 = smul.addr %s475, 128
        %s477 = scalar_lea.vmem [#allocation7], %s476
        %p478 = pneg %p120
        %p479 = pneg %p117
        %s480 = sand.u32 %s135, 1
        %s481 = scalar_lea.sflag [#allocation9], %s480
        %s482 = sand.u32 %s135, 1
        %s483 = smul.addr %s482, 8
        %s484 = scalar_lea.vmem [#allocation8], %s483
        %p485 = pneg %p148
        %p486 = pneg %p145
        %p487 = pneg %p169
        %p488 = pneg %p166
        %p489 = pneg %p190
        %p490 = pneg %p187
        %p491 = pneg %p218
        %p492 = pneg %p215
        %s493 = sand.u32 %s205, 1
        %s494 = scalar_lea.sflag [#allocation4], %s493
        %s495 = sand.u32 %s205, 1
        %s496 = smul.addr %s495, 8
        %s497 = scalar_lea.vmem [#allocation10], %s496
        %s498 = smul.u32 4, %s34
        %s499 = smul.u32 4, %s34
        %s500 = smul.u32 4, %s34
        %v501 = vld [vmem:[%s423] sm:$0xff]
        %v502 = vld [vmem:[%s423 + $0x8] sm:$0xff]
        %v503 = vld [vmem:[%s423 + $0x10] sm:$0xff]
        %v504 = vld [vmem:[%s423 + $0x18] sm:$0xff]
        %v505 = vld [vmem:[%s423 + $0x20] sm:$0xff]
        %v506 = vld [vmem:[%s423 + $0x28] sm:$0xff]
        %v507 = vld [vmem:[%s423 + $0x30] sm:$0xff]
        %v508 = vld [vmem:[%s423 + $0x38] sm:$0xff]
        %v509 = vld [vmem:[%s423 + $0x40] sm:$0xff]
        %v510 = vld [vmem:[%s423 + $0x48] sm:$0xff]
        %v511 = vld [vmem:[%s423 + $0x50] sm:$0xff]
        %v512 = vld [vmem:[%s423 + $0x58] sm:$0xff]
        %v513 = vld [vmem:[%s433] sm:$0xff]
        %v514 = vld [vmem:[%s433 + $0x8] sm:$0xff]
        %v515 = vld [vmem:[%s433 + $0x10] sm:$0xff]
        %v516 = vld [vmem:[%s433 + $0x18] sm:$0xff]
        %v517 = vld [vmem:[%s433 + $0x20] sm:$0xff]
        %v518 = vld [vmem:[%s433 + $0x28] sm:$0xff]
        %v519 = vld [vmem:[%s433 + $0x30] sm:$0xff]
        %v520 = vld [vmem:[%s433 + $0x38] sm:$0xff]
        %v521 = vld [vmem:[%s433 + $0x40] sm:$0xff]
        %v522 = vld [vmem:[%s433 + $0x48] sm:$0xff]
        %v523 = vld [vmem:[%s433 + $0x50] sm:$0xff]
        %v524 = vld [vmem:[%s433 + $0x58] sm:$0xff]
        %v525 = vld [vmem:[%s443] sm:$0xff]
        %v526 = vld [vmem:[%s443 + $0x8] sm:$0xff]
        %v527 = vld [vmem:[%s443 + $0x10] sm:$0xff]
        %v528 = vld [vmem:[%s443 + $0x18] sm:$0xff]
        %v529 = vld [vmem:[%s443 + $0x20] sm:$0xff]
        %v530 = vld [vmem:[%s443 + $0x28] sm:$0xff]
        %v531 = vld [vmem:[%s443 + $0x30] sm:$0xff]
        %v532 = vld [vmem:[%s443 + $0x38] sm:$0xff]
        %v533 = vld [vmem:[%s443 + $0x40] sm:$0xff]
        %v534 = vld [vmem:[%s443 + $0x48] sm:$0xff]
        %v535 = vld [vmem:[%s443 + $0x50] sm:$0xff]
        %v536 = vld [vmem:[%s443 + $0x58] sm:$0xff]
        %v537 = vld [vmem:[%s443 + $0x60] sm:$0xff]
        %v538 = vld [vmem:[%s443 + $0x68] sm:$0xff]
        %v539 = vld [vmem:[%s443 + $0x70] sm:$0xff]
        %v540 = vld [vmem:[%s443 + $0x78] sm:$0xff]
        %v541 = vlaneseq
        %v542 = vshrl.u32 %v541, 7
        %v543 = vadd.s32 %v542, 8
        %v544 = vadd.s32 %v542, 16
        %v545 = vadd.s32 %v542, 24
        %s546 = smul.u32 %s34, 32
        %v547 = vstv %s546
        %v548 = vadd.s32 %v542, %v547
        %v549 = vadd.s32 %v543, %v547
        %v550 = vadd.s32 %v544, %v547
        %v551 = vadd.s32 %v545, %v547
        %v552 = vlaneseq
        %v553 = vand.u32 %v552, 127
        %vm554 = vcmp.ge.s32.totalorder %v548, 2
        %vm555 = vcmp.ge.s32.totalorder %v549, 2
        %vm556 = vcmp.ge.s32.totalorder %v550, 2
        %vm557 = vcmp.ge.s32.totalorder %v551, 2
        %vm558 = vcmp.lt.s32.totalorder %v548, 126
        %vm559 = vcmp.lt.s32.totalorder %v549, 126
        %vm560 = vcmp.lt.s32.totalorder %v550, 126
        %vm561 = vcmp.lt.s32.totalorder %v551, 126
        %vm562 = vmand %vm554, %vm558
        %vm563 = vmand %vm555, %vm559
        %vm564 = vmand %vm556, %vm560
        %vm565 = vmand %vm557, %vm561
        %vm566 = vcmp.ge.s32.totalorder %v553, 2
        %vm567 = vmand %vm562, %vm566
        %vm568 = vmand %vm563, %vm566
        %vm569 = vmand %vm564, %vm566
        %vm570 = vmand %vm565, %vm566
        %vm571 = vcmp.lt.s32.totalorder %v553, 126
        %vm572 = vmand %vm567, %vm571
        %vm573 = vmand %vm568, %vm571
        %vm574 = vmand %vm569, %vm571
        %vm575 = vmand %vm570, %vm571
        %v576 = vsel %vm572, 1, 0
        %v577 = vsel %vm573, 1, 0
        %v578 = vsel %vm574, 1, 0
        %v579 = vsel %vm575, 1, 0
        %v580 = vcvt.s32.f32 %v576
        %v581 = vcvt.s32.f32 %v577
        %v582 = vcvt.s32.f32 %v578
        %v583 = vcvt.s32.f32 %v579
        %v584 = vsub.f32 %v501, %v513
        %v585 = vsub.f32 %v502, %v514
        %v586 = vsub.f32 %v503, %v515
        %v587 = vsub.f32 %v504, %v516
        %v588 = vsub.f32 %v505, %v517
        %v589 = vsub.f32 %v506, %v518
        %v590 = vsub.f32 %v507, %v519
        %v591 = vsub.f32 %v508, %v520
        %v592 = vsub.f32 %v509, %v521
        %v593 = vsub.f32 %v510, %v522
        %v594 = vsub.f32 %v511, %v523
        %v595 = vsub.f32 %v512, %v524
        %v596 = vmul.f32 %v584, %v580
        %v597 = vmul.f32 %v585, %v581
        %v598 = vmul.f32 %v586, %v582
        %v599 = vmul.f32 %v587, %v583
        %v600 = vmul.f32 %v588, %v580
        %v601 = vmul.f32 %v589, %v581
        %v602 = vmul.f32 %v590, %v582
        %v603 = vmul.f32 %v591, %v583
        %v604 = vmul.f32 %v592, %v580
        %v605 = vmul.f32 %v593, %v581
        %v606 = vmul.f32 %v594, %v582
        %v607 = vmul.f32 %v595, %v583
        %v608 = vmul.f32 %v596, %v596
        %v609 = vmul.f32 %v597, %v597
        %v610 = vmul.f32 %v598, %v598
        %v611 = vmul.f32 %v599, %v599
        %v612 = vmul.f32 %v600, %v600
        %v613 = vmul.f32 %v601, %v601
        %v614 = vmul.f32 %v602, %v602
        %v615 = vmul.f32 %v603, %v603
        %v616 = vmul.f32 %v604, %v604
        %v617 = vmul.f32 %v605, %v605
        %v618 = vmul.f32 %v606, %v606
        %v619 = vmul.f32 %v607, %v607
        %v620 = vadd.f32 %v608, %v609
        %v621 = vadd.f32 %v620, %v610
        %v622 = vadd.f32 %v621, %v611
        %v623 = vadd.f32 %v622, %v612
        %v624 = vadd.f32 %v623, %v613
        %v625 = vadd.f32 %v624, %v614
        %v626 = vadd.f32 %v625, %v615
        %v627 = vadd.f32 %v626, %v616
        %v628 = vadd.f32 %v627, %v617
        %v629 = vadd.f32 %v628, %v618
        %v630 = vadd.f32 %v629, %v619
        %631 = vadd.xlane.f32.xlu0 %v630
        %v632 = vpop.xlane.xlu0 %631
        %v633 = vrot.slane %v632, 4
        %v634 = vadd.f32 %v632, %v633
        %v635 = vrot.slane %v634, 2
        %v636 = vadd.f32 %v634, %v635
        %v637 = vrot.slane %v636, 1
        %v638 = vadd.f32 %v636, %v637
        %s639 = vtos %v638
        %v640 = vand.u32 2147483647, %v596
        %v641 = vand.u32 2147483647, %v597
        %v642 = vand.u32 2147483647, %v598
        %v643 = vand.u32 2147483647, %v599
        %v644 = vand.u32 2147483647, %v600
        %v645 = vand.u32 2147483647, %v601
        %v646 = vand.u32 2147483647, %v602
        %v647 = vand.u32 2147483647, %v603
        %v648 = vand.u32 2147483647, %v604
        %v649 = vand.u32 2147483647, %v605
        %v650 = vand.u32 2147483647, %v606
        %v651 = vand.u32 2147483647, %v607
        %v652 = vadd.f32 %v640, %v641
        %v653 = vadd.f32 %v652, %v642
        %v654 = vadd.f32 %v653, %v643
        %v655 = vadd.f32 %v654, %v644
        %v656 = vadd.f32 %v655, %v645
        %v657 = vadd.f32 %v656, %v646
        %v658 = vadd.f32 %v657, %v647
        %v659 = vadd.f32 %v658, %v648
        %v660 = vadd.f32 %v659, %v649
        %v661 = vadd.f32 %v660, %v650
        %v662 = vadd.f32 %v661, %v651
        %663 = vadd.xlane.f32.xlu0 %v662
        %v664 = vpop.xlane.xlu0 %663
        %v665 = vrot.slane %v664, 4
        %v666 = vadd.f32 %v664, %v665
        %v667 = vrot.slane %v666, 2
        %v668 = vadd.f32 %v666, %v667
        %v669 = vrot.slane %v668, 1
        %v670 = vadd.f32 %v668, %v669
        %s671 = vtos %v670
        %v672 = vsub.f32 %v513, %v525
        %v673 = vsub.f32 %v514, %v526
        %v674 = vsub.f32 %v515, %v527
        %v675 = vsub.f32 %v516, %v528
        %v676 = vsub.f32 %v517, %v529
        %v677 = vsub.f32 %v518, %v530
        %v678 = vsub.f32 %v519, %v531
        %v679 = vsub.f32 %v520, %v532
        %v680 = vsub.f32 %v521, %v533
        %v681 = vsub.f32 %v522, %v534
        %v682 = vsub.f32 %v523, %v535
        %v683 = vsub.f32 %v524, %v536
        %v684 = vmul.f32 %v672, %v580
        %v685 = vmul.f32 %v673, %v581
        %v686 = vmul.f32 %v674, %v582
        %v687 = vmul.f32 %v675, %v583
        %v688 = vmul.f32 %v676, %v580
        %v689 = vmul.f32 %v677, %v581
        %v690 = vmul.f32 %v678, %v582
        %v691 = vmul.f32 %v679, %v583
        %v692 = vmul.f32 %v680, %v580
        %v693 = vmul.f32 %v681, %v581
        %v694 = vmul.f32 %v682, %v582
        %v695 = vmul.f32 %v683, %v583
        %v696 = vmul.f32 %v537, %v580
        %v697 = vmul.f32 %v538, %v581
        %v698 = vmul.f32 %v539, %v582
        %v699 = vmul.f32 %v540, %v583
        %v700 = vld [vmem:[%s453] sm:$0xff]
        %v701 = vld [vmem:[%s4] sm:$0xff]
        %v702 = vld [vmem:[%s4 + $0x8] sm:$0xff]
        %v703 = vld [vmem:[%s4 + $0x10] sm:$0xff]
        %v704 = vld [vmem:[%s4 + $0x18] sm:$0xff]
        %vm705 = vcmask 64512
        %v707 = vsel %vm705, %v701, 0
        %v710 = vsel %vm705, %v702, 0
        %v713 = vsel %vm705, %v703, 0
        %v716 = vsel %vm705, %v704, 0
        %718 = vmatpush.msra.mxu0 0.0
        %719 = vmatpush.msra.mxu0 0.0
        %720 = vmatpush.msra.mxu0 0.0
        %721 = vmatpush.msra.mxu0 0.0
        %722 = vmatpush.msra.mxu0 0.0
        %723 = vmatpush.msra.mxu0 0.0
        %724 = vmatpush.msra.mxu0 0.0
        %725 = vmatpush.msra.mxu0 0.0
        %726 = vmatpush.msra.mxu0 0.0
        %727 = vmatpush.msra.mxu0 0.0
        %728 = vmatpush.msra.mxu0 0.0
        %729 = vmatpush.msra.mxu0 0.0
        %730 = vmatpush.msra.mxu0 0.0
        %731 = vmatpush.msra.mxu0 0.0
        %732 = vmatpush.msra.mxu0 0.0
        %733 = vmatpush.msra.mxu0 %v700
        %734 = vmatmul.f32.gmra.mxu0 %v707
        %v735 = vpop.f32.mrf.mxu0
        %v736 = vadd.f32 0.0, %v735
        %737 = vmatmul.f32.gmra.mxu0 %v710
        %v738 = vpop.f32.mrf.mxu0
        %v739 = vadd.f32 0.0, %v738
        %740 = vmatmul.f32.gmra.mxu0 %v713
        %v741 = vpop.f32.mrf.mxu0
        %v742 = vadd.f32 0.0, %v741
        %743 = vmatmul.f32.gmra.mxu0 %v716
        %v744 = vpop.f32.mrf.mxu0
        %v745 = vadd.f32 0.0, %v744
        %746 = vdwg.mxu0
        %v747 = vld [vmem:[%s5] sm:$0xff]
        %v748 = vld [vmem:[%s5 + $0x8] sm:$0xff]
        %v749 = vld [vmem:[%s5 + $0x10] sm:$0xff]
        %v750 = vld [vmem:[%s5 + $0x18] sm:$0xff]
        %vm751 = vcmask 261120
        %v753 = vsel %vm751, %v736, 0
        %v756 = vsel %vm751, %v739, 0
        %v759 = vsel %vm751, %v742, 0
        %v762 = vsel %vm751, %v745, 0
        %764 = vmatpush.msra.mxu0 0.0
        %765 = vmatpush.msra.mxu0 0.0
        %766 = vmatpush.msra.mxu0 0.0
        %767 = vmatpush.msra.mxu0 0.0
        %768 = vmatpush.msra.mxu0 0.0
        %769 = vmatpush.msra.mxu0 0.0
        %770 = vmatpush.msra.mxu0 0.0
        %771 = vmatpush.msra.mxu0 0.0
        %772 = vmatpush.msra.mxu0 0.0
        %773 = vmatpush.msra.mxu0 0.0
        %774 = vmatpush.msra.mxu0 0.0
        %775 = vmatpush.msra.mxu0 0.0
        %776 = vmatpush.msra.mxu0 %v750
        %777 = vmatpush.msra.mxu0 %v749
        %778 = vmatpush.msra.mxu0 %v748
        %779 = vmatpush.msra.mxu0 %v747
        %780 = vmatmul.f32.gmra.mxu0 %v753
        %v781 = vpop.f32.mrf.mxu0
        %v782 = vadd.f32 0.0, %v781
        %783 = vmatmul.f32.gmra.mxu0 %v756
        %v784 = vpop.f32.mrf.mxu0
        %v785 = vadd.f32 0.0, %v784
        %786 = vmatmul.f32.gmra.mxu0 %v759
        %v787 = vpop.f32.mrf.mxu0
        %v788 = vadd.f32 0.0, %v787
        %789 = vmatmul.f32.gmra.mxu0 %v762
        %v790 = vpop.f32.mrf.mxu0
        %v791 = vadd.f32 0.0, %v790
        %792 = vdwg.mxu0
        %v793 = vsub.f32 %v782, %v696
        %v794 = vsub.f32 %v785, %v697
        %v795 = vsub.f32 %v788, %v698
        %v796 = vsub.f32 %v791, %v699
        %v797 = vmul.f32 %v684, %v684
        %v798 = vmul.f32 %v685, %v685
        %v799 = vmul.f32 %v686, %v686
        %v800 = vmul.f32 %v687, %v687
        %v801 = vmul.f32 %v688, %v688
        %v802 = vmul.f32 %v689, %v689
        %v803 = vmul.f32 %v690, %v690
        %v804 = vmul.f32 %v691, %v691
        %v805 = vmul.f32 %v692, %v692
        %v806 = vmul.f32 %v693, %v693
        %v807 = vmul.f32 %v694, %v694
        %v808 = vmul.f32 %v695, %v695
        %v809 = vadd.f32 %v797, %v798
        %v810 = vadd.f32 %v809, %v799
        %v811 = vadd.f32 %v810, %v800
        %v812 = vadd.f32 %v811, %v801
        %v813 = vadd.f32 %v812, %v802
        %v814 = vadd.f32 %v813, %v803
        %v815 = vadd.f32 %v814, %v804
        %v816 = vadd.f32 %v815, %v805
        %v817 = vadd.f32 %v816, %v806
        %v818 = vadd.f32 %v817, %v807
        %v819 = vadd.f32 %v818, %v808
        %820 = vadd.xlane.f32.xlu0 %v819
        %v821 = vpop.xlane.xlu0 %820
        %v822 = vrot.slane %v821, 4
        %v823 = vadd.f32 %v821, %v822
        %v824 = vrot.slane %v823, 2
        %v825 = vadd.f32 %v823, %v824
        %v826 = vrot.slane %v825, 1
        %v827 = vadd.f32 %v825, %v826
        %s828 = vtos %v827
        %v829 = vmul.f32 %v793, %v793
        %v830 = vmul.f32 %v794, %v794
        %v831 = vmul.f32 %v795, %v795
        %v832 = vmul.f32 %v796, %v796
        %v833 = vadd.f32 %v829, %v830
        %v834 = vadd.f32 %v833, %v831
        %v835 = vadd.f32 %v834, %v832
        %836 = vadd.xlane.f32.xlu0 %v835
        %v837 = vpop.xlane.xlu0 %836
        %v838 = vrot.slane %v837, 4
        %v839 = vadd.f32 %v837, %v838
        %v840 = vrot.slane %v839, 2
        %v841 = vadd.f32 %v839, %v840
        %v842 = vrot.slane %v841, 1
        %v843 = vadd.f32 %v841, %v842
        %s844 = vtos %v843
        %s845 = sadd.f32 %s828, %s844
        %vm846 = vcmp.eq.s32.totalorder %v542, 0
        %vm847 = vcmp.eq.s32.totalorder %v542, 1
        %vm848 = vcmp.eq.s32.totalorder %v542, 2
        %v849 = vstv %s845
        %v850 = vsel %vm848, %v849, 0.0
        %v851 = vstv %s671
        %v852 = vsel %vm847, %v851, %v850
        %v853 = vstv %s639
        %v854 = vsel %vm846, %v853, %v852
        %855 = vst [vmem:[%s497] sm:$0xff] %v854
        %s856 = sand.u32 %s205, 1
        %s857 = scalar_lea.sflag [#allocation4], %s856
        %s858 = sand.u32 %s205, 1
        %s859 = smul.addr %s858, 8
        %s860 = scalar_lea.vmem [#allocation10], %s859
        // Predicated region
        $region61: #{tpu_custom_call.1} parent=43 // pred_check
          %p861 = pneg %p215
        $region62: #{tpu_custom_call.1} parent=43 // pred_check_branch
          %863 = sbr.rel (%p861) target = $region64
        $region63: #{tpu_custom_call.1} parent=43 // pred_region
          %865 = vsyncadd %s857, 0
          %s866 = smul.addr %s33, 4
          %s867 = sadd.s32 %s34, %s866
          %s868 = smul.addr %s867, 8
          %s869 = scalar_lea.hbm %s6, %s868
          %s871 = sshll.u32 %s860, 4
          %s872 = int_to_ptr.vmem [resolvable:$true] %s871
          %s873 = sshll.u32 %s869, 4
          %s874 = int_to_ptr.hbm [resolvable:$true] %s873
          %876 = dma.vmem_to_hbm [thread:$0]  %s872, 128, %s874, %s857
        $region64: #{tpu_custom_call.1} parent=43 // pred_fallthru
          _
      $region44: #{tpu_custom_call.1} parent=5 // pred_fallthru
        _
      %p877 = scmp.le.s32.totalorder 2, %s24
      // Predicated region
      $region65: #{tpu_custom_call.1} parent=5 // pred_check
        %p878 = pneg %p877
      $region66: #{tpu_custom_call.1} parent=5 // pred_check_branch
        %880 = sbr.rel (%p878) target = $region68
      $region67: #{tpu_custom_call.1} parent=5 // pred_region
        %s881 = ssub.s32 %s24, 2
        // Predicated region
        $region69: #{tpu_custom_call.1} parent=67 // pred_check
          %p882 = pneg %p221
        $region70: #{tpu_custom_call.1} parent=67 // pred_check_branch
          %884 = sbr.rel (%p882) target = $region72
        $region71: #{tpu_custom_call.1} parent=67 // pred_region
          %s885 = sand.u32 %s206, 1
          %s886 = scalar_lea.sflag [#allocation4], %s885
          %s887 = sand.u32 %s206, 1
          %s888 = smul.addr %s887, 8
          %s889 = scalar_lea.vmem [#allocation10], %s888
          %891 = dma.done %s886, 128
        $region72: #{tpu_custom_call.1} parent=67 // pred_fallthru
          _
      $region68: #{tpu_custom_call.1} parent=5 // pred_fallthru
        _
    $region6: #{tpu_custom_call.1} parent=1 // loop_footer
      %s28 = sadd.s32 1, %s24
    $region7: #{tpu_custom_call.1} parent=1 // loop_footer_branch
      %23 = sbr.rel target = $region3
    $region8: #{tpu_custom_call.1} parent=1 // loop_exit
      _
    %892 = vsyncpa [#allocation3], 1
    %s893 = scalar_lea.sflag [#allocation3], 1
    %894 = vsyncpa %s893, 1
    %895 = vsyncpa [#allocation6], 1
    %s896 = scalar_lea.sflag [#allocation6], 1
    %897 = vsyncpa %s896, 1
    %898 = vsyncpa [#allocation9], 1
    %s899 = scalar_lea.sflag [#allocation9], 1
    %900 = vsyncpa %s899, 1
    %901 = vsyncpa [#allocation4], 1
    %s902 = scalar_lea.sflag [#allocation4], 1
    %903 = vsyncpa %s902, 1

</llo_original>
